<compile_context>
chip_gen: v5e
topology: v5e:2x2
jax: 0.10.0
libtpu: 0.0.40
codegen_flags: <defaults>
</compile_context>

<pallas_src>
import functools

import jax
import jax.numpy as jnp
from jax.experimental import pallas as pl
from jax.experimental.pallas import tpu as pltpu

EPS = 1e-5  # adaLIN default eps


# ------------------------------ Pallas kernel ---------------------------------

def _adalin_kernel(x_ref, gamma_ref, beta_ref, rho_ref, o_ref,
                   sum_sc, m2_sc, s_sc, t_sc, *, hw, eps):
    # x_ref:     (1, C, THW)  spatial tile of one sample (channels on sublanes)
    # gamma_ref: (1, C, 1)    per-sample per-channel scale
    # beta_ref:  (1, C, 1)    per-sample per-channel shift
    # rho_ref:   (C, 1)       learned IN/LN mixing weight (shared across batch)
    # o_ref:     (1, C, THW)
    # scratch:   sum_sc/m2_sc/s_sc/t_sc  all (C, 1) f32, persistent across grid steps
    p = pl.program_id(1)            # 0 = stats pass, 1 = apply pass
    ti = pl.program_id(2)           # spatial tile index
    nt = pl.num_programs(2)
    thw = x_ref.shape[2]

    # ---------------- pass 0: per-channel stats (stable chunk merge) -----------
    @pl.when(p == 0)
    def _stats():
        x = x_ref[0].astype(jnp.float32)                   # (C, THW) f32 math
        ts = jnp.sum(x, axis=1, keepdims=True)             # tile sum        (C,1)
        tm = ts * (1.0 / thw)                              # tile mean       (C,1)
        xc = x - tm
        tm2 = jnp.sum(xc * xc, axis=1, keepdims=True)      # tile centered SS (C,1)

        @pl.when(ti == 0)
        def _init():
            sum_sc[...] = ts
            m2_sc[...] = tm2

        @pl.when(ti > 0)
        def _merge():
            # Chan et al. pairwise merge of (count, sum, M2) — no cancellation.
            n_prev = (ti * thw).astype(jnp.float32)
            mean_prev = sum_sc[...] * (1.0 / n_prev)
            delta = tm - mean_prev
            w = n_prev * thw / (n_prev + thw)
            m2_sc[...] = m2_sc[...] + tm2 + delta * delta * w
            sum_sc[...] = sum_sc[...] + ts

        # ---- finalize: derive LN stats from IN stats, fuse affine into (s, t) --
        @pl.when(ti == nt - 1)
        def _finalize():
            C = sum_sc.shape[0]
            in_mean = sum_sc[...] * (1.0 / hw)                               # (C,1)
            in_ss = m2_sc[...]                                               # (C,1)
            in_var = in_ss * (1.0 / (hw - 1))                                # ddof=1

            # LN stats from IN stats (all channels have equal pixel count hw).
            ln_mean = jnp.sum(in_mean, axis=0, keepdims=True) * (1.0 / C)    # (1,1)
            d = in_mean - ln_mean
            ln_ss = jnp.sum(in_ss + hw * d * d, axis=0, keepdims=True)       # (1,1)
            ln_var = ln_ss * (1.0 / (C * hw - 1))                            # ddof=1

            r_in = jax.lax.rsqrt(in_var + eps)                               # (C,1)
            r_ln = jax.lax.rsqrt(ln_var + eps)                               # (1,1)

            rho = rho_ref[...]                                               # (C,1)
            gamma = gamma_ref[0]                                             # (C,1)
            beta = beta_ref[0]                                               # (C,1)

            mix_scale = rho * r_in + (1.0 - rho) * r_ln
            mix_shift = rho * in_mean * r_in + (1.0 - rho) * ln_mean * r_ln
            s_sc[...] = gamma * mix_scale
            t_sc[...] = beta - gamma * mix_shift

    # ---------------- pass 1: single fused FMA per element ---------------------
    @pl.when(p == 1)
    def _apply():
        x = x_ref[0].astype(jnp.float32)
        o_ref[0] = (x * s_sc[...] + t_sc[...]).astype(o_ref.dtype)


# ------------------------------ tiling helpers ---------------------------------

def _pick_spatial_tile(hw, c, in_bytes, out_bytes, budget_bytes):
    """Largest spatial tile (divisor of hw, 128-aligned unless == hw) within budget."""
    def working_set(thw):
        # double-buffered input tile + double-buffered output tile
        return 2 * c * thw * (in_bytes + out_bytes)

    if working_set(hw) <= budget_bytes:
        return hw
    divisors = [t for t in range(128, hw, 128) if hw % t == 0]
    for t in sorted(divisors, reverse=True):
        if working_set(t) <= budget_bytes:
            return t
    return divisors[0] if divisors else hw


# ------------------------------ wrapper ----------------------------------------

def adalin_forward(x_nchw, gamma, beta, rho, eps=EPS, *,
                   spatial_tile=None, vmem_budget_bytes=24 << 20):
    """Pallas implementation of adaLIN.forward.

    x_nchw: (N, C, H, W); gamma, beta: (N, C); rho: reshapable to (C,).
    Returns (N, C, H, W) in the input dtype.
    """
    N, C, H, W = x_nchw.shape
    HW = H * W
    assert HW > 1 and C * HW > 1, "unbiased variance needs >1 element"

    x = x_nchw.reshape(N, C, HW)                       # contiguous reshape, native dtype
    g = gamma.reshape(N, C, 1).astype(jnp.float32)
    b = beta.reshape(N, C, 1).astype(jnp.float32)
    r = rho.reshape(C, 1).astype(jnp.float32)

    in_bytes = x.dtype.itemsize
    out_dtype = x.dtype
    out_bytes = jnp.dtype(out_dtype).itemsize

    thw = (spatial_tile if spatial_tile is not None
           else _pick_spatial_tile(HW, C, in_bytes, out_bytes, vmem_budget_bytes))
    assert HW % thw == 0, "spatial tile must divide H*W"
    assert thw == HW or thw % 128 == 0, "spatial tile must be lane-aligned"
    T = HW // thw

    # Explicit VMEM budget: double-buffered in/out tiles + params/scratch + headroom.
    tile_bytes = 2 * C * thw * (in_bytes + out_bytes)
    vmem_limit = int(min(max(tile_bytes + (4 << 20), 8 << 20), 96 << 20))

    kernel = functools.partial(_adalin_kernel, hw=HW, eps=float(eps))

    out = pl.pallas_call(
        kernel,
        out_shape=jax.ShapeDtypeStruct((N, C, HW), out_dtype),
        grid=(N, 2, T),
        in_specs=[
            pl.BlockSpec((1, C, thw), lambda n, p, t: (n, 0, t)),
            pl.BlockSpec((1, C, 1), lambda n, p, t: (n, 0, 0)),
            pl.BlockSpec((1, C, 1), lambda n, p, t: (n, 0, 0)),
            pl.BlockSpec((C, 1), lambda n, p, t: (0, 0)),
        ],
        # During the stats pass the output block index stays pinned at tile 0 so no
        # garbage is written back; the apply pass writes each tile exactly once.
        out_specs=pl.BlockSpec((1, C, thw), lambda n, p, t: (n, 0, t * p)),
        scratch_shapes=[pltpu.VMEM((C, 1), jnp.float32)] * 4,
        compiler_params=pltpu.CompilerParams(
            dimension_semantics=("parallel", "arbitrary", "arbitrary"),
            vmem_limit_bytes=vmem_limit,
        ),
    )(x, g, b, r)
    return out.reshape(N, C, H, W)


# ------------------------------ pure-JAX reference ------------------------------

def adalin_ref(x, gamma, beta, rho, eps=EPS):
    # torch.var default is unbiased (ddof=1)
    in_mean = jnp.mean(x, axis=(2, 3), keepdims=True)
    in_var = jnp.var(x, axis=(2, 3), keepdims=True, ddof=1)
    out_in = (x - in_mean) / jnp.sqrt(in_var + eps)
    ln_mean = jnp.mean(x, axis=(1, 2, 3), keepdims=True)
    ln_var = jnp.var(x, axis=(1, 2, 3), keepdims=True, ddof=1)
    out_ln = (x - ln_mean) / jnp.sqrt(ln_var + eps)
    rho_b = rho.reshape(1, -1, 1, 1)
    out = rho_b * out_in + (1.0 - rho_b) * out_ln
    return out * gamma[:, :, None, None] + beta[:, :, None, None]


# ------------------------------ main -------------------------------------------

if __name__ == "__main__":
    key = jax.random.PRNGKey(0)
    N, C, H, W = 2, 4, 16, 16
    k0, k1, k2 = jax.random.split(key, 3)

    # non-zero mean / non-unit scale so the centered-stats path actually matters
    x = jax.random.normal(k0, (N, C, H, W), jnp.float32) * 2.0 + 0.5
    gamma = jax.random.normal(k1, (N, C), jnp.float32) * 0.5 + 1.0
    beta = jax.random.normal(k2, (N, C), jnp.float32) * 0.1
    rho = jnp.full((1, C, 1, 1), 0.9, jnp.float32)   # Parameter init: fill_(0.9)

    y_ref = adalin_ref(x, gamma, beta, rho)

    # 1) default path: whole sample resident, T == 1, single HBM read per sample
    y = jax.block_until_ready(adalin_forward(x, gamma, beta, rho))
    assert y.shape == (N, C, H, W) and y.dtype == x.dtype
    err = float(jnp.max(jnp.abs(y - y_ref)))
    assert jnp.allclose(y, y_ref, atol=1e-4, rtol=1e-4), f"max abs err={err}"

    # 2) tiled two-pass path (v7x-style HW tiling), forced THW=128 -> T=2
    y_t = jax.block_until_ready(adalin_forward(x, gamma, beta, rho, spatial_tile=128))
    err_t = float(jnp.max(jnp.abs(y_t - y_ref)))
    assert jnp.allclose(y_t, y_ref, atol=1e-4, rtol=1e-4), f"tiled max abs err={err_t}"

    # 3) native-dtype (bf16) I/O path: stats still accumulate in f32 inside the kernel
    x_bf16 = x.astype(jnp.bfloat16)
    y_bf = jax.block_until_ready(adalin_forward(x_bf16, gamma, beta, rho))
    assert y_bf.dtype == jnp.bfloat16
    y_bf_ref = adalin_ref(x_bf16.astype(jnp.float32), gamma, beta, rho)
    assert jnp.allclose(y_bf.astype(jnp.float32), y_bf_ref, atol=2e-2, rtol=2e-2)

    print("KERNEL_OK")
</pallas_src>

<mosaic_0001>
module attributes {stable_mosaic.version = 11 : i64} {
  func.func @_adalin_kernel(%arg0: i32, %arg1: i32, %arg2: i32, %arg3: memref<1x4x256xf32, #tpu.memory_space<vmem>>, %arg4: memref<1x4x1xf32, #tpu.memory_space<vmem>>, %arg5: memref<1x4x1xf32, #tpu.memory_space<vmem>>, %arg6: memref<4x1xf32, #tpu.memory_space<vmem>>, %arg7: memref<1x4x256xf32, #tpu.memory_space<vmem>>, %arg8: memref<4x1xf32, #tpu.memory_space<vmem>>, %arg9: memref<4x1xf32, #tpu.memory_space<vmem>>, %arg10: memref<4x1xf32, #tpu.memory_space<vmem>>, %arg11: memref<4x1xf32, #tpu.memory_space<vmem>>) attributes {dimension_semantics = [#tpu.dimension_semantics<parallel>, #tpu.dimension_semantics<arbitrary>, #tpu.dimension_semantics<arbitrary>], iteration_bounds = array<i64: 2, 2, 1>, scalar_prefetch = 0 : i64, scratch_operands = 4 : i64, tpu.core_type = #tpu.core_type<tc>, window_params = [{transform_indices = @transform_0, window_bounds = array<i64: 1, 4, 256>}, {transform_indices = @transform_1, window_bounds = array<i64: 1, 4, 1>}, {transform_indices = @transform_2, window_bounds = array<i64: 1, 4, 1>}, {pipeline_mode = #tpu.pipeline_mode<synchronous>, transform_indices = @transform_3, window_bounds = array<i64: 4, 1>}, {transform_indices = @transform_4, window_bounds = array<i64: 1, 4, 256>}]} {
    %c0_i32 = arith.constant 0 : i32
    %0 = arith.cmpi eq, %arg1, %c0_i32 : i32
    %1 = arith.extui %0 : i1 to i32
    %c0_i32_0 = arith.constant 0 : i32
    %2 = arith.cmpi ne, %1, %c0_i32_0 : i32
    scf.if %2 {
      %c0 = arith.constant 0 : index
      %c0_2 = arith.constant 0 : index
      %c0_3 = arith.constant 0 : index
      %6 = vector.load %arg3[%c0, %c0_2, %c0_3] : memref<1x4x256xf32, #tpu.memory_space<vmem>>, vector<1x4x256xf32>
      %7 = vector.shape_cast %6 : vector<1x4x256xf32> to vector<4x256xf32>
      %cst = arith.constant dense<0.000000e+00> : vector<4xf32>
      %8 = vector.multi_reduction <add>, %7, %cst [1] : vector<4x256xf32> to vector<4xf32>
      %9 = vector.shape_cast %8 : vector<4xf32> to vector<4x1xf32>
      %cst_4 = arith.constant 3.906250e-03 : f32
      %10 = vector.broadcast %cst_4 : f32 to vector<4x1xf32>
      %11 = arith.mulf %9, %10 : vector<4x1xf32>
      %12 = vector.broadcast %11 : vector<4x1xf32> to vector<4x256xf32>
      %13 = arith.subf %7, %12 : vector<4x256xf32>
      %14 = arith.mulf %13, %13 : vector<4x256xf32>
      %cst_5 = arith.constant dense<0.000000e+00> : vector<4xf32>
      %15 = vector.multi_reduction <add>, %14, %cst_5 [1] : vector<4x256xf32> to vector<4xf32>
      %16 = vector.shape_cast %15 : vector<4xf32> to vector<4x1xf32>
      %c0_i32_6 = arith.constant 0 : i32
      %17 = arith.cmpi eq, %arg2, %c0_i32_6 : i32
      %18 = arith.extui %17 : i1 to i32
      %c0_i32_7 = arith.constant 0 : i32
      %19 = arith.cmpi ne, %18, %c0_i32_7 : i32
      scf.if %19 {
        %c0_12 = arith.constant 0 : index
        %c0_13 = arith.constant 0 : index
        %26 = vector.load %arg8[%c0_12, %c0_13] : memref<4x1xf32, #tpu.memory_space<vmem>>, vector<4x1xf32>
        tpu.vector_store %arg8[%c0_12, %c0_13], %9 {strides = array<i32>} : memref<4x1xf32, #tpu.memory_space<vmem>>, vector<4x1xf32>,
        %c0_14 = arith.constant 0 : index
        %c0_15 = arith.constant 0 : index
        %27 = vector.load %arg9[%c0_14, %c0_15] : memref<4x1xf32, #tpu.memory_space<vmem>>, vector<4x1xf32>
        tpu.vector_store %arg9[%c0_14, %c0_15], %16 {strides = array<i32>} : memref<4x1xf32, #tpu.memory_space<vmem>>, vector<4x1xf32>,
      } else {
      }
      %c0_i32_8 = arith.constant 0 : i32
      %20 = arith.cmpi sgt, %arg2, %c0_i32_8 : i32
      %21 = arith.extui %20 : i1 to i32
      %c0_i32_9 = arith.constant 0 : i32
      %22 = arith.cmpi ne, %21, %c0_i32_9 : i32
      scf.if %22 {
        %c256_i32 = arith.constant 256 : i32
        %26 = arith.muli %arg2, %c256_i32 : i32
        %27 = arith.sitofp %26 : i32 to f32
        %c0_12 = arith.constant 0 : index
        %c0_13 = arith.constant 0 : index
        %28 = vector.load %arg8[%c0_12, %c0_13] : memref<4x1xf32, #tpu.memory_space<vmem>>, vector<4x1xf32>
        %cst_14 = arith.constant 1.000000e+00 : f32
        %29 = arith.divf %cst_14, %27 : f32
        %30 = vector.broadcast %29 : f32 to vector<4x1xf32>
        %31 = arith.mulf %28, %30 : vector<4x1xf32>
        %32 = arith.subf %11, %31 : vector<4x1xf32>
        %cst_15 = arith.constant 2.560000e+02 : f32
        %33 = arith.mulf %27, %cst_15 : f32
        %cst_16 = arith.constant 2.560000e+02 : f32
        %34 = arith.addf %27, %cst_16 : f32
        %35 = arith.divf %33, %34 : f32
        %c0_17 = arith.constant 0 : index
        %c0_18 = arith.constant 0 : index
        %36 = vector.load %arg9[%c0_17, %c0_18] : memref<4x1xf32, #tpu.memory_space<vmem>>, vector<4x1xf32>
        %37 = arith.addf %36, %16 : vector<4x1xf32>
        %38 = arith.mulf %32, %32 : vector<4x1xf32>
        %39 = vector.broadcast %35 : f32 to vector<4x1xf32>
        %40 = arith.mulf %38, %39 : vector<4x1xf32>
        %41 = arith.addf %37, %40 : vector<4x1xf32>
        %c0_19 = arith.constant 0 : index
        %c0_20 = arith.constant 0 : index
        %42 = vector.load %arg9[%c0_19, %c0_20] : memref<4x1xf32, #tpu.memory_space<vmem>>, vector<4x1xf32>
        tpu.vector_store %arg9[%c0_19, %c0_20], %41 {strides = array<i32>} : memref<4x1xf32, #tpu.memory_space<vmem>>, vector<4x1xf32>,
        %c0_21 = arith.constant 0 : index
        %c0_22 = arith.constant 0 : index
        %43 = vector.load %arg8[%c0_21, %c0_22] : memref<4x1xf32, #tpu.memory_space<vmem>>, vector<4x1xf32>
        %44 = arith.addf %43, %9 : vector<4x1xf32>
        %c0_23 = arith.constant 0 : index
        %c0_24 = arith.constant 0 : index
        %45 = vector.load %arg8[%c0_23, %c0_24] : memref<4x1xf32, #tpu.memory_space<vmem>>, vector<4x1xf32>
        tpu.vector_store %arg8[%c0_23, %c0_24], %44 {strides = array<i32>} : memref<4x1xf32, #tpu.memory_space<vmem>>, vector<4x1xf32>,
      } else {
      }
      %c0_i32_10 = arith.constant 0 : i32
      %23 = arith.cmpi eq, %arg2, %c0_i32_10 : i32
      %24 = arith.extui %23 : i1 to i32
      %c0_i32_11 = arith.constant 0 : i32
      %25 = arith.cmpi ne, %24, %c0_i32_11 : i32
      scf.if %25 {
        %c0_12 = arith.constant 0 : index
        %c0_13 = arith.constant 0 : index
        %26 = vector.load %arg8[%c0_12, %c0_13] : memref<4x1xf32, #tpu.memory_space<vmem>>, vector<4x1xf32>
        %cst_14 = arith.constant 3.906250e-03 : f32
        %27 = vector.broadcast %cst_14 : f32 to vector<4x1xf32>
        %28 = arith.mulf %26, %27 : vector<4x1xf32>
        %c0_15 = arith.constant 0 : index
        %c0_16 = arith.constant 0 : index
        %29 = vector.load %arg9[%c0_15, %c0_16] : memref<4x1xf32, #tpu.memory_space<vmem>>, vector<4x1xf32>
        %cst_17 = arith.constant 0.00392156886 : f32
        %30 = vector.broadcast %cst_17 : f32 to vector<4x1xf32>
        %31 = arith.mulf %29, %30 : vector<4x1xf32>
        %cst_18 = arith.constant dense<0.000000e+00> : vector<1xf32>
        %32 = vector.multi_reduction <add>, %28, %cst_18 [0] : vector<4x1xf32> to vector<1xf32>
        %33 = vector.shape_cast %32 : vector<1xf32> to vector<1x1xf32>
        %cst_19 = arith.constant 2.500000e-01 : f32
        %34 = vector.broadcast %cst_19 : f32 to vector<1x1xf32>
        %35 = arith.mulf %33, %34 : vector<1x1xf32>
        %36 = vector.broadcast %35 : vector<1x1xf32> to vector<4x1xf32>
        %37 = arith.subf %28, %36 : vector<4x1xf32>
        %cst_20 = arith.constant 2.560000e+02 : f32
        %38 = vector.broadcast %cst_20 : f32 to vector<4x1xf32>
        %39 = arith.mulf %38, %37 : vector<4x1xf32>
        %40 = arith.mulf %39, %37 : vector<4x1xf32>
        %41 = arith.addf %29, %40 : vector<4x1xf32>
        %cst_21 = arith.constant dense<0.000000e+00> : vector<1xf32>
        %42 = vector.multi_reduction <add>, %41, %cst_21 [0] : vector<4x1xf32> to vector<1xf32>
        %43 = vector.shape_cast %42 : vector<1xf32> to vector<1x1xf32>
        %cst_22 = arith.constant 9.77517105E-4 : f32
        %44 = vector.broadcast %cst_22 : f32 to vector<1x1xf32>
        %45 = arith.mulf %43, %44 : vector<1x1xf32>
        %cst_23 = arith.constant 9.99999974E-6 : f32
        %46 = vector.broadcast %cst_23 : f32 to vector<4x1xf32>
        %47 = arith.addf %31, %46 : vector<4x1xf32>
        %48 = math.rsqrt %47 : vector<4x1xf32>
        %cst_24 = arith.constant 9.99999974E-6 : f32
        %49 = vector.broadcast %cst_24 : f32 to vector<1x1xf32>
        %50 = arith.addf %45, %49 : vector<1x1xf32>
        %51 = math.rsqrt %50 : vector<1x1xf32>
        %c0_25 = arith.constant 0 : index
        %c0_26 = arith.constant 0 : index
        %52 = vector.load %arg6[%c0_25, %c0_26] : memref<4x1xf32, #tpu.memory_space<vmem>>, vector<4x1xf32>
        %c0_27 = arith.constant 0 : index
        %c0_28 = arith.constant 0 : index
        %c0_29 = arith.constant 0 : index
        %53 = vector.load %arg4[%c0_27, %c0_28, %c0_29] : memref<1x4x1xf32, #tpu.memory_space<vmem>>, vector<1x4x1xf32>
        %54 = vector.shape_cast %53 : vector<1x4x1xf32> to vector<4x1xf32>
        %c0_30 = arith.constant 0 : index
        %c0_31 = arith.constant 0 : index
        %c0_32 = arith.constant 0 : index
        %55 = vector.load %arg5[%c0_30, %c0_31, %c0_32] : memref<1x4x1xf32, #tpu.memory_space<vmem>>, vector<1x4x1xf32>
        %56 = vector.shape_cast %55 : vector<1x4x1xf32> to vector<4x1xf32>
        %57 = arith.mulf %52, %48 : vector<4x1xf32>
        %cst_33 = arith.constant 1.000000e+00 : f32
        %58 = vector.broadcast %cst_33 : f32 to vector<4x1xf32>
        %59 = arith.subf %58, %52 : vector<4x1xf32>
        %60 = vector.broadcast %51 : vector<1x1xf32> to vector<4x1xf32>
        %61 = arith.mulf %59, %60 : vector<4x1xf32>
        %62 = arith.addf %57, %61 : vector<4x1xf32>
        %63 = arith.mulf %52, %28 : vector<4x1xf32>
        %64 = arith.mulf %63, %48 : vector<4x1xf32>
        %cst_34 = arith.constant 1.000000e+00 : f32
        %65 = vector.broadcast %cst_34 : f32 to vector<4x1xf32>
        %66 = arith.subf %65, %52 : vector<4x1xf32>
        %67 = vector.broadcast %35 : vector<1x1xf32> to vector<4x1xf32>
        %68 = arith.mulf %66, %67 : vector<4x1xf32>
        %69 = vector.broadcast %51 : vector<1x1xf32> to vector<4x1xf32>
        %70 = arith.mulf %68, %69 : vector<4x1xf32>
        %71 = arith.addf %64, %70 : vector<4x1xf32>
        %72 = arith.mulf %54, %62 : vector<4x1xf32>
        %c0_35 = arith.constant 0 : index
        %c0_36 = arith.constant 0 : index
        %73 = vector.load %arg10[%c0_35, %c0_36] : memref<4x1xf32, #tpu.memory_space<vmem>>, vector<4x1xf32>
        tpu.vector_store %arg10[%c0_35, %c0_36], %72 {strides = array<i32>} : memref<4x1xf32, #tpu.memory_space<vmem>>, vector<4x1xf32>,
        %74 = arith.mulf %54, %71 : vector<4x1xf32>
        %75 = arith.subf %56, %74 : vector<4x1xf32>
        %c0_37 = arith.constant 0 : index
        %c0_38 = arith.constant 0 : index
        %76 = vector.load %arg11[%c0_37, %c0_38] : memref<4x1xf32, #tpu.memory_space<vmem>>, vector<4x1xf32>
        tpu.vector_store %arg11[%c0_37, %c0_38], %75 {strides = array<i32>} : memref<4x1xf32, #tpu.memory_space<vmem>>, vector<4x1xf32>,
      } else {
      }
    } else {
    }
    %c1_i32 = arith.constant 1 : i32
    %3 = arith.cmpi eq, %arg1, %c1_i32 : i32
    %4 = arith.extui %3 : i1 to i32
    %c0_i32_1 = arith.constant 0 : i32
    %5 = arith.cmpi ne, %4, %c0_i32_1 : i32
    scf.if %5 {
      %c0 = arith.constant 0 : index
      %c0_2 = arith.constant 0 : index
      %c0_3 = arith.constant 0 : index
      %6 = vector.load %arg3[%c0, %c0_2, %c0_3] : memref<1x4x256xf32, #tpu.memory_space<vmem>>, vector<1x4x256xf32>
      %7 = vector.shape_cast %6 : vector<1x4x256xf32> to vector<4x256xf32>
      %c0_4 = arith.constant 0 : index
      %c0_5 = arith.constant 0 : index
      %8 = vector.load %arg10[%c0_4, %c0_5] : memref<4x1xf32, #tpu.memory_space<vmem>>, vector<4x1xf32>
      %9 = vector.broadcast %8 : vector<4x1xf32> to vector<4x256xf32>
      %10 = arith.mulf %7, %9 : vector<4x256xf32>
      %c0_6 = arith.constant 0 : index
      %c0_7 = arith.constant 0 : index
      %11 = vector.load %arg11[%c0_6, %c0_7] : memref<4x1xf32, #tpu.memory_space<vmem>>, vector<4x1xf32>
      %12 = vector.broadcast %11 : vector<4x1xf32> to vector<4x256xf32>
      %13 = arith.addf %10, %12 : vector<4x256xf32>
      %c0_8 = arith.constant 0 : index
      %c0_9 = arith.constant 0 : index
      %c0_10 = arith.constant 0 : index
      %14 = vector.load %arg7[%c0_8, %c0_9, %c0_10] : memref<1x4x256xf32, #tpu.memory_space<vmem>>, vector<1x4x256xf32>
      %15 = vector.shape_cast %14 : vector<1x4x256xf32> to vector<4x256xf32>
      %16 = vector.shape_cast %13 : vector<4x256xf32> to vector<1x4x256xf32>
      tpu.vector_store %arg7[%c0_8, %c0_9, %c0_10], %16 {strides = array<i32>} : memref<1x4x256xf32, #tpu.memory_space<vmem>>, vector<1x4x256xf32>,
    } else {
    }
    return
  }
  func.func @transform_0(%arg0: i32, %arg1: i32, %arg2: i32) -> (i32, i32, i32) {
    %c0_i32 = arith.constant 0 : i32
    %c0_i32_0 = arith.constant 0 : i32
    return %arg0, %c0_i32, %arg2 : i32, i32, i32
  }
  func.func @transform_1(%arg0: i32, %arg1: i32, %arg2: i32) -> (i32, i32, i32) {
    %c0_i32 = arith.constant 0 : i32
    %c0_i32_0 = arith.constant 0 : i32
    %c0_i32_1 = arith.constant 0 : i32
    return %arg0, %c0_i32, %c0_i32_0 : i32, i32, i32
  }
  func.func @transform_2(%arg0: i32, %arg1: i32, %arg2: i32) -> (i32, i32, i32) {
    %c0_i32 = arith.constant 0 : i32
    %c0_i32_0 = arith.constant 0 : i32
    %c0_i32_1 = arith.constant 0 : i32
    return %arg0, %c0_i32, %c0_i32_0 : i32, i32, i32
  }
  func.func @transform_3(%arg0: i32, %arg1: i32, %arg2: i32) -> (i32, i32) {
    %c0_i32 = arith.constant 0 : i32
    %c0_i32_0 = arith.constant 0 : i32
    %c0_i32_1 = arith.constant 0 : i32
    return %c0_i32, %c0_i32_0 : i32, i32
  }
  func.func @transform_4(%arg0: i32, %arg1: i32, %arg2: i32) -> (i32, i32, i32) {
    %0 = arith.muli %arg2, %arg1 : i32
    %c0_i32 = arith.constant 0 : i32
    %c0_i32_0 = arith.constant 0 : i32
    return %arg0, %c0_i32, %0 : i32, i32, i32
  }
}

</mosaic_0001>

<llo_original>
// kernel: tpu_custom_call.1
$region0: #{tpu_custom_call.1}
  #allocation0 [shape = 'u32[]', space=smem, size = 0x4, offset = 0x4, fixed_abs, tag = 'smem constant byte address 0x4 - core index']
  #allocation1 [shape = 'u32[72,128]{1,0:T(1,128)}', space=vmem, size = 0x9000, scoped, tag = 'internal scratch']
  #allocation2 [shape = 'f32[4,1]{1,0:T(4,128)}', space=vmem, size = 0x800, scoped, tag = 'scratch operand']
  #allocation3 [shape = 'f32[4,1]{1,0:T(4,128)}', space=vmem, size = 0x800, scoped, tag = 'scratch operand']
  #allocation4 [shape = 'f32[4,1]{1,0:T(4,128)}', space=vmem, size = 0x800, scoped, tag = 'scratch operand']
  #allocation5 [shape = 'f32[4,1]{1,0:T(4,128)}', space=vmem, size = 0x800, scoped, tag = 'scratch operand']
  %s0 = inlined_call_operand.vmem [shape: f32[2,4,256], index: 0, kind: input, shape index: {}]
  %s1 = inlined_call_operand.vmem [shape: f32[2,4,1], index: 1, kind: input, shape index: {}]
  %s2 = inlined_call_operand.vmem [shape: f32[2,4,1], index: 2, kind: input, shape index: {}]
  %s3 = inlined_call_operand.vmem [shape: f32[4,1], index: 3, kind: input, shape index: {}]
  %s4 = inlined_call_operand.hbm [shape: f32[2,4,256], index: 4, kind: output, shape index: {}]
  %s5 = sld [smem:[#allocation0]]
  $region69: #{tpu_custom_call.1} parent=0
    _
  %s7 = ssub.s32 1, %s5
  %s8 = scalar_select 0, %s7, %s5
  $region1: #{tpu_custom_call.1} parent=0
    #allocation6 [shape = 'u8[8192]{0}', space=vmem, size = 0x2000, scoped, tag = 'output window, operand 0']
    #allocation7 [shape = 's32[2]{0}', space=sflag, size = 0x8, scoped, tag = 'scoped memory for tpu_custom_call.1']
    %9 = vsyncpa [#allocation7], 0
    %s10 = scalar_lea.sflag [#allocation7], 1
    %11 = vsyncpa %s10, 0
    loop: start=0, step=1, limit=6
    $region2: #{tpu_custom_call.1} parent=1 // loop_pre_header
      _
    $region3: #{tpu_custom_call.1} parent=1 // loop_header
      %s13 = sphi 0, %s17
      %p14 = scmp.ge.s32.totalorder %s13, 6
      %s20 = sphi 0, %s39
      %s21 = sphi 0, %s35
      %s22 = sphi 0, %s31
      %s23 = sphi 0, %s20
      %s24 = sphi 0, %s21
      %s25 = sphi 0, %s22
      %s26 = sphi 0, %s23
      %s27 = sphi 0, %s24
      %s28 = sphi 0, %s25
      %s44 = sphi 0, %s46
      %s47 = sphi 0, %s44
      %s48 = sphi 0, %s47
      %s64 = sphi 0, %s48
      %s70 = sphi 0, %s72
      %s73 = sphi 0, %s70
      %s74 = sphi 0, %s73
      %s90 = sphi 0, %s74
      %s96 = sphi 0, %s98
      %s99 = sphi 0, %s96
      %s100 = sphi 0, %s99
      %s116 = sphi 0, %s100
      %s120 = sphi 0, %s120
      %s122 = sphi 0, %s120
      %s123 = sphi 0, %s122
      %s137 = sphi 0, %s123
      %s147 = sphi 0, %s149
      %s150 = sphi 0, %s147
      %s151 = sphi 0, %s150
      %s167 = sphi 0, %s151
    $region4: #{tpu_custom_call.1} parent=1 // loop_header_branch
      %16 = sbr.rel (%p14) target = $region8
    $region5: #{tpu_custom_call.1} parent=1 // loop_body
      %s18 = ssub.s32 %s13, 1
      %s19 = ssub.s32 %s13, 2
      %s29 = sadd.s32 1, %s22
      %p30 = scmp.ge.s32.totalorder %s29, 1
      %s31 = scalar_select %p30, 0, %s29
      %s32 = sadd.s32 1, %s21
      %s33 = scalar_select %p30, %s32, %s21
      %p34 = scmp.ge.s32.totalorder %s33, 2
      %s35 = scalar_select %p34, 0, %s33
      %s36 = sadd.s32 1, %s20
      %s37 = scalar_select %p34, %s36, %s20
      %p38 = scmp.ge.s32.totalorder %s37, 2
      %s39 = scalar_select %p38, 0, %s37
      %s40 = ssub.s32 %s20, %s39
      %s41 = ssub.s32 %s22, %s31
      %s42 = sor.u32 %s40, %s41
      %p43 = scmp.eq.s32.totalorder %s42, 0
      %s45 = sadd.s32 %s44, 1
      %s46 = scalar_select %p43, %s44, %s45
      %p49 = pneg %p43
      %p50 = scmp.eq.s32.totalorder %s13, 3
      %p51 = por %p49, %p50
      %p52 = scmp.ne.s32.totalorder %s44, %s47
      %p53 = scmp.eq.s32.totalorder %s13, 0
      %p54 = por %p52, %p53
      %p55 = scmp.ne.s32.totalorder %s44, %s47
      %p56 = scmp.eq.s32.totalorder %s18, 3
      %p57 = por %p55, %p56
      %p58 = scmp.ne.s32.totalorder %s47, %s48
      %p59 = scmp.eq.s32.totalorder %s18, 0
      %p60 = por %p58, %p59
      %p61 = scmp.ne.s32.totalorder %s47, %s48
      %p62 = scmp.eq.s32.totalorder %s19, 3
      %p63 = por %p61, %p62
      %p65 = scmp.ne.s32.totalorder %s48, %s64
      %p66 = scmp.eq.s32.totalorder %s19, 0
      %p67 = por %p65, %p66
      %s68 = ssub.s32 %s20, %s39
      %p69 = scmp.eq.s32.totalorder %s68, 0
      %s71 = sadd.s32 %s70, 1
      %s72 = scalar_select %p69, %s70, %s71
      %p75 = pneg %p69
      %p76 = scmp.eq.s32.totalorder %s13, 3
      %p77 = por %p75, %p76
      %p78 = scmp.ne.s32.totalorder %s70, %s73
      %p79 = scmp.eq.s32.totalorder %s13, 0
      %p80 = por %p78, %p79
      %p81 = scmp.ne.s32.totalorder %s70, %s73
      %p82 = scmp.eq.s32.totalorder %s18, 3
      %p83 = por %p81, %p82
      %p84 = scmp.ne.s32.totalorder %s73, %s74
      %p85 = scmp.eq.s32.totalorder %s18, 0
      %p86 = por %p84, %p85
      %p87 = scmp.ne.s32.totalorder %s73, %s74
      %p88 = scmp.eq.s32.totalorder %s19, 3
      %p89 = por %p87, %p88
      %p91 = scmp.ne.s32.totalorder %s74, %s90
      %p92 = scmp.eq.s32.totalorder %s19, 0
      %p93 = por %p91, %p92
      %s94 = ssub.s32 %s20, %s39
      %p95 = scmp.eq.s32.totalorder %s94, 0
      %s97 = sadd.s32 %s96, 1
      %s98 = scalar_select %p95, %s96, %s97
      %p101 = pneg %p95
      %p102 = scmp.eq.s32.totalorder %s13, 3
      %p103 = por %p101, %p102
      %p104 = scmp.ne.s32.totalorder %s96, %s99
      %p105 = scmp.eq.s32.totalorder %s13, 0
      %p106 = por %p104, %p105
      %p107 = scmp.ne.s32.totalorder %s96, %s99
      %p108 = scmp.eq.s32.totalorder %s18, 3
      %p109 = por %p107, %p108
      %p110 = scmp.ne.s32.totalorder %s99, %s100
      %p111 = scmp.eq.s32.totalorder %s18, 0
      %p112 = por %p110, %p111
      %p113 = scmp.ne.s32.totalorder %s99, %s100
      %p114 = scmp.eq.s32.totalorder %s19, 3
      %p115 = por %p113, %p114
      %p117 = scmp.ne.s32.totalorder %s100, %s116
      %p118 = scmp.eq.s32.totalorder %s19, 0
      %p119 = por %p117, %p118
      %s121 = sadd.s32 %s120, 1
      %p124 = scmp.eq.s32.totalorder %s13, 3
      %p125 = scmp.ne.s32.totalorder %s120, %s122
      %p126 = scmp.eq.s32.totalorder %s13, 0
      %p127 = por %p125, %p126
      %p128 = scmp.ne.s32.totalorder %s120, %s122
      %p129 = scmp.eq.s32.totalorder %s18, 3
      %p130 = por %p128, %p129
      %p131 = scmp.ne.s32.totalorder %s122, %s123
      %p132 = scmp.eq.s32.totalorder %s18, 0
      %p133 = por %p131, %p132
      %p134 = scmp.ne.s32.totalorder %s122, %s123
      %p135 = scmp.eq.s32.totalorder %s19, 3
      %p136 = por %p134, %p135
      %p138 = scmp.ne.s32.totalorder %s123, %s137
      %p139 = scmp.eq.s32.totalorder %s19, 0
      %p140 = por %p138, %p139
      %s141 = smul.u32 %s22, %s21
      %s142 = smul.u32 %s31, %s35
      %s143 = ssub.s32 %s20, %s39
      %s144 = ssub.s32 %s141, %s142
      %s145 = sor.u32 %s143, %s144
      %p146 = scmp.eq.s32.totalorder %s145, 0
      %s148 = sadd.s32 %s147, 1
      %s149 = scalar_select %p146, %s147, %s148
      %p152 = pneg %p146
      %p153 = scmp.eq.s32.totalorder %s13, 3
      %p154 = por %p152, %p153
      %p155 = scmp.ne.s32.totalorder %s147, %s150
      %p156 = scmp.eq.s32.totalorder %s13, 0
      %p157 = por %p155, %p156
      %p158 = scmp.ne.s32.totalorder %s147, %s150
      %p159 = scmp.eq.s32.totalorder %s18, 3
      %p160 = por %p158, %p159
      %p161 = scmp.ne.s32.totalorder %s150, %s151
      %p162 = scmp.eq.s32.totalorder %s18, 0
      %p163 = por %p161, %p162
      %p164 = scmp.ne.s32.totalorder %s150, %s151
      %p165 = scmp.eq.s32.totalorder %s19, 3
      %p166 = por %p164, %p165
      %p168 = scmp.ne.s32.totalorder %s151, %s167
      %p169 = scmp.eq.s32.totalorder %s19, 0
      %p170 = por %p168, %p169
      %p171 = scmp.le.s32.totalorder 1, %s13
      %p172 = scmp.lt.s32.totalorder %s13, 5
      %p173 = pnand %p171, %p172
      %p174 = pneg %p173
      // Predicated region
      $region9: #{tpu_custom_call.1} parent=5 // pred_check
        _
      $region10: #{tpu_custom_call.1} parent=5 // pred_check_branch
        %176 = sbr.rel (%p173) target = $region12
      $region11: #{tpu_custom_call.1} parent=5 // pred_region
        %s177 = ssub.s32 %s13, 1
        // Predicated region
        $region13: #{tpu_custom_call.1} parent=11 // pred_check
          %p178 = pneg %p133
        $region14: #{tpu_custom_call.1} parent=11 // pred_check_branch
          %180 = sbr.rel (%p178) target = $region16
        $region15: #{tpu_custom_call.1} parent=11 // pred_region
          _
        $region16: #{tpu_custom_call.1} parent=11 // pred_fallthru
          _
      $region12: #{tpu_custom_call.1} parent=5 // pred_fallthru
        _
      %p181 = scmp.lt.s32.totalorder %s13, 4
      // Predicated region
      $region17: #{tpu_custom_call.1} parent=5 // pred_check
        %p182 = pneg %p181
      $region18: #{tpu_custom_call.1} parent=5 // pred_check_branch
        %184 = sbr.rel (%p182) target = $region20
      $region19: #{tpu_custom_call.1} parent=5 // pred_region
        // Predicated region
        $region21: #{tpu_custom_call.1} parent=19 // pred_check
          %p185 = pneg %p54
        $region22: #{tpu_custom_call.1} parent=19 // pred_check_branch
          %187 = sbr.rel (%p185) target = $region24
        $region23: #{tpu_custom_call.1} parent=19 // pred_region
          %s188 = smul.u32 2, %s22
          %p189 = scmp.lt.s32.totalorder %s20, 1
          %s190 = scalar_select %p189, %s20, 1
          %p191 = scmp.lt.s32.totalorder %s188, 1
          %s192 = scalar_select %p191, %s188, 1
          %s193 = smul.addr %s190, 2
          %s194 = sadd.s32 %s192, %s193
          %s195 = smul.addr %s194, 4
          %s196 = scalar_lea.vmem %s0, %s195
          %s197 = smul.u32 2, %s22
        $region24: #{tpu_custom_call.1} parent=19 // pred_fallthru
          _
        // Predicated region
        $region25: #{tpu_custom_call.1} parent=19 // pred_check
          %p198 = pneg %p80
        $region26: #{tpu_custom_call.1} parent=19 // pred_check_branch
          %200 = sbr.rel (%p198) target = $region28
        $region27: #{tpu_custom_call.1} parent=19 // pred_region
          %p201 = scmp.lt.s32.totalorder %s20, 1
          %s202 = scalar_select %p201, %s20, 1
          %s203 = smul.addr %s202, 4
          %s204 = scalar_lea.vmem %s1, %s203
        $region28: #{tpu_custom_call.1} parent=19 // pred_fallthru
          _
        // Predicated region
        $region29: #{tpu_custom_call.1} parent=19 // pred_check
          %p205 = pneg %p106
        $region30: #{tpu_custom_call.1} parent=19 // pred_check_branch
          %207 = sbr.rel (%p205) target = $region32
        $region31: #{tpu_custom_call.1} parent=19 // pred_region
          %p208 = scmp.lt.s32.totalorder %s20, 1
          %s209 = scalar_select %p208, %s20, 1
          %s210 = smul.addr %s209, 4
          %s211 = scalar_lea.vmem %s2, %s210
        $region32: #{tpu_custom_call.1} parent=19 // pred_fallthru
          _
      $region20: #{tpu_custom_call.1} parent=5 // pred_fallthru
        _
      %p212 = scmp.le.s32.totalorder 1, %s13
      %p213 = scmp.lt.s32.totalorder %s13, 5
      %p214 = pnand %p212, %p213
      %p215 = pneg %p214
      // Predicated region
      $region33: #{tpu_custom_call.1} parent=5 // pred_check
        _
      $region34: #{tpu_custom_call.1} parent=5 // pred_check_branch
        %217 = sbr.rel (%p214) target = $region36
      $region35: #{tpu_custom_call.1} parent=5 // pred_region
        %s218 = ssub.s32 %s13, 1
        %s219 = smul.u32 2, %s25
        %p220 = scmp.lt.s32.totalorder %s23, 1
        %s221 = scalar_select %p220, %s23, 1
        %p222 = scmp.lt.s32.totalorder %s219, 1
        %s223 = scalar_select %p222, %s219, 1
        %s224 = smul.addr %s221, 2
        %s225 = sadd.s32 %s223, %s224
        %s226 = smul.addr %s225, 4
        %s227 = scalar_lea.vmem %s0, %s226
        %p228 = pneg %p60
        %p229 = pneg %p57
        %p230 = scmp.lt.s32.totalorder %s23, 1
        %s231 = scalar_select %p230, %s23, 1
        %s232 = smul.addr %s231, 4
        %s233 = scalar_lea.vmem %s1, %s232
        %p234 = pneg %p86
        %p235 = pneg %p83
        %p236 = scmp.lt.s32.totalorder %s23, 1
        %s237 = scalar_select %p236, %s23, 1
        %s238 = smul.addr %s237, 4
        %s239 = scalar_lea.vmem %s2, %s238
        %p240 = pneg %p112
        %p241 = pneg %p109
        %p242 = pneg %p133
        %p243 = pneg %p130
        %p244 = pneg %p163
        %p245 = pneg %p160
        %s246 = sand.u32 %s150, 1
        %s247 = scalar_lea.sflag [#allocation7], %s246
        %s248 = sand.u32 %s150, 1
        %s249 = smul.addr %s248, 8
        %s250 = scalar_lea.vmem [#allocation6], %s249
        %s251 = smul.u32 2, %s25
        %p252 = scmp.lt.s32.totalorder %s23, 1
        %s253 = scalar_select %p252, %s23, 1
        %p254 = scmp.lt.s32.totalorder %s251, 1
        %s255 = scalar_select %p254, %s251, 1
        %s256 = smul.addr %s253, 2
        %s257 = sadd.s32 %s255, %s256
        %s258 = smul.addr %s257, 4
        %s259 = scalar_lea.vmem %s0, %s258
        %s260 = smul.u32 2, %s25
        %p261 = scmp.lt.s32.totalorder %s23, 1
        %s262 = scalar_select %p261, %s23, 1
        %s263 = smul.addr %s262, 4
        %s264 = scalar_lea.vmem %s1, %s263
        %p265 = scmp.lt.s32.totalorder %s23, 1
        %s266 = scalar_select %p265, %s23, 1
        %s267 = smul.addr %s266, 4
        %s268 = scalar_lea.vmem %s2, %s267
        %s269 = smul.u32 %s25, %s24
        %s270 = smul.u32 2, %s269
        %p271 = scmp.eq.s32.totalorder %s24, 0
        // Predicated region
        $region37: #{tpu_custom_call.1} parent=35 // pred_check
          %p272 = pneg %p271
        $region38: #{tpu_custom_call.1} parent=35 // pred_check_branch
          %274 = sbr.rel (%p272) target = $region40
        $region39: #{tpu_custom_call.1} parent=35 // pred_region
          %v275 = vld [vmem:[%s259] sm:$0xff]
          %277 = vst [vmem:[#allocation1] ss:$2 sm:$0xff] %v275
          %v278 = vld.sshfl [vmem:[#allocation1] sm:$0xff pattern:$0x75316420]
          %v279 = vld.sshfl [vmem:[#allocation1 + $0x8] sm:$0xff pattern:$0x75316420]
          %vm282 = vcmask 1043456
          %v283 = vsel %vm282, %v278, 0.0
          %v284 = vsel %vm282, %v279, 0.0
          %v285 = vadd.f32 %v283, %v284
          %286 = vadd.xlane.f32.xlu0 %v285
          %v287 = vpop.xlane.xlu0 %286
          %v288 = vmul.f32 %v287, 0.00390625
          %v291 = vunpack.c.l.s4 839922192
          %v292 = vunpack.c.0.s8 %v291
          %v293 = vperm.slane %v288, %v292
          %v295 = vsub.f32 %v275, %v293
          %v296 = vmul.f32 %v295, %v295
          %298 = vst [vmem:[#allocation1] ss:$2 sm:$0xff] %v296
          %v299 = vld.sshfl [vmem:[#allocation1] sm:$0xff pattern:$0x75316420]
          %v300 = vld.sshfl [vmem:[#allocation1 + $0x8] sm:$0xff pattern:$0x75316420]
          %v303 = vsel %vm282, %v299, 0.0
          %v304 = vsel %vm282, %v300, 0.0
          %v305 = vadd.f32 %v303, %v304
          %306 = vadd.xlane.f32.xlu0 %v305
          %v307 = vpop.xlane.xlu0 %306
          %p308 = scmp.eq.s32.totalorder %s25, 0
          // Predicated region
          $region41: #{tpu_custom_call.1} parent=39 // pred_check
            %p309 = pneg %p308
          $region42: #{tpu_custom_call.1} parent=39 // pred_check_branch
            %311 = sbr.rel (%p309) target = $region44
          $region43: #{tpu_custom_call.1} parent=39 // pred_region
            %vm312 = vcmask 3072
            %313 = vst.msk [vmem:[#allocation2] sm:$0xf] %vm312, %v287
            %314 = vst.msk [vmem:[#allocation3] sm:$0xf] %vm312, %v307
          $region44: #{tpu_custom_call.1} parent=39 // pred_fallthru
            _
          %p315 = scmp.gt.s32.totalorder %s25, 0
          // Predicated region
          $region45: #{tpu_custom_call.1} parent=39 // pred_check
            %p316 = pneg %p315
          $region46: #{tpu_custom_call.1} parent=39 // pred_check_branch
            %318 = sbr.rel (%p316) target = $region48
          $region47: #{tpu_custom_call.1} parent=39 // pred_region
            %s319 = smul.u32 %s25, 256
            %s320 = scvt.s32.f32 %s319
            %v321 = vld [vmem:[#allocation2] sm:$0xf]
            %v322 = vstv %s320
            %v323 = vrcp.pop %v322
            %v324 = vmul.f32 %v322, %v323
            %v325 = vsub.f32 1.0, %v324
            %v326 = vmul.f32 %v323, %v325
            %v327 = vadd.f32 %v323, %v326
            %vm328 = vweird.f32 %v322
            %vm329 = vweird.f32 %v323
            %vm330 = vmor %vm328, %vm329
            %v331 = vsel %vm330, %v323, %v327
            %v332 = vand.u32 2147483647, %v322
            %vm333 = vcmp.eq.f32.partialorder %v332, 8.507059e+37
            %v334 = vand.u32 %v322, 2147483648
            %v335 = vor.u32 1.1754944e-38, %v334
            %v336 = vsel %vm333, %v335, %v331
            %s337 = vtos %v336
            %v338 = vstv %s337
            %v339 = vmul.f32 %v321, %v338
            %v340 = vsub.f32 %v288, %v339
            %s341 = smul.f32 %s320, 256.0
            %s342 = sadd.f32 %s320, 256.0
            %v343 = vstv %s342
            %v344 = vrcp.pop %v343
            %v345 = vmul.f32 %v343, %v344
            %v346 = vsub.f32 1.0, %v345
            %v347 = vmul.f32 %v344, %v346
            %v348 = vadd.f32 %v344, %v347
            %vm349 = vweird.f32 %v343
            %vm350 = vweird.f32 %v344
            %vm351 = vmor %vm349, %vm350
            %v352 = vsel %vm351, %v344, %v348
            %v353 = vand.u32 2147483647, %v343
            %vm354 = vcmp.eq.f32.partialorder %v353, 8.507059e+37
            %v355 = vand.u32 %v343, 2147483648
            %v356 = vor.u32 1.1754944e-38, %v355
            %v357 = vsel %vm354, %v356, %v352
            %s358 = vtos %v357
            %s359 = smul.f32 %s341, %s358
            %v360 = vld [vmem:[#allocation3] sm:$0xf]
            %v361 = vadd.f32 %v360, %v307
            %v362 = vmul.f32 %v340, %v340
            %v363 = vstv %s359
            %v364 = vmul.f32 %v362, %v363
            %v365 = vadd.f32 %v361, %v364
            %vm366 = vcmask 3072
            %367 = vst.msk [vmem:[#allocation3] sm:$0xf] %vm366, %v365
            %v368 = vld [vmem:[#allocation2] sm:$0xf]
            %v369 = vadd.f32 %v368, %v287
            %370 = vst.msk [vmem:[#allocation2] sm:$0xf] %vm366, %v369
          $region48: #{tpu_custom_call.1} parent=39 // pred_fallthru
            _
          // Predicated region
          $region49: #{tpu_custom_call.1} parent=39 // pred_check
            %p371 = pneg %p308
          $region50: #{tpu_custom_call.1} parent=39 // pred_check_branch
            %373 = sbr.rel (%p371) target = $region52
          $region51: #{tpu_custom_call.1} parent=39 // pred_region
            %v374 = vld [vmem:[#allocation2] sm:$0xf]
            %v375 = vmul.f32 %v374, 0.00390625
            %v376 = vld [vmem:[#allocation3] sm:$0xf]
            %v377 = vmul.f32 %v376, 0.003921569
            %vm378 = vcmask 3072
            %v379 = vsel %vm378, %v375, 0.0
            %v380 = vrot.slane %v379, 4
            %v381 = vadd.f32 %v379, %v380
            %v382 = vrot.slane %v381, 2
            %v383 = vadd.f32 %v381, %v382
            %v384 = vrot.slane %v383, 1
            %v385 = vadd.f32 %v383, %v384
            %v386 = vmul.f32 %v385, 0.25
            %v387 = vsub.f32 %v375, %v386
            %v388 = vmul.f32 %v387, 256.0
            %v389 = vmul.f32 %v388, %v387
            %v390 = vadd.f32 %v376, %v389
            %v391 = vsel %vm378, %v390, 0.0
            %v392 = vrot.slane %v391, 4
            %v393 = vadd.f32 %v391, %v392
            %v394 = vrot.slane %v393, 2
            %v395 = vadd.f32 %v393, %v394
            %v396 = vrot.slane %v395, 1
            %v397 = vadd.f32 %v395, %v396
            %v398 = vmul.f32 %v397, 0.0009775171
            %v399 = vadd.f32 %v377, 1e-05
            %v400 = vrsqrt.pop %v399
            %v401 = vmul.f32 %v400, %v399
            %v402 = vmul.f32 %v401, %v400
            %v403 = vmul.f32 0.5, %v402
            %v404 = vsub.f32 1.5, %v403
            %v405 = vmul.f32 %v400, %v404
            %vm406 = vweird.f32 %v399
            %vm407 = vweird.f32 %v400
            %vm408 = vmor %vm406, %vm407
            %v409 = vsel %vm408, %v400, %v405
            %v410 = vadd.f32 %v398, 1e-05
            %v411 = vrsqrt.pop %v410
            %v412 = vmul.f32 %v411, %v410
            %v413 = vmul.f32 %v412, %v411
            %v414 = vmul.f32 0.5, %v413
            %v415 = vsub.f32 1.5, %v414
            %v416 = vmul.f32 %v411, %v415
            %vm417 = vweird.f32 %v410
            %vm418 = vweird.f32 %v411
            %vm419 = vmor %vm417, %vm418
            %v420 = vsel %vm419, %v411, %v416
            %v421 = vld [vmem:[%s3] sm:$0xf]
            %v422 = vld [vmem:[%s264] sm:$0xf]
            %v423 = vld [vmem:[%s268] sm:$0xf]
            %v424 = vmul.f32 %v421, %v409
            %v425 = vsub.f32 1.0, %v421
            %v426 = vmul.f32 %v425, %v420
            %v427 = vadd.f32 %v424, %v426
            %v428 = vmul.f32 %v421, %v375
            %v429 = vmul.f32 %v428, %v409
            %v430 = vmul.f32 %v425, %v386
            %v431 = vmul.f32 %v430, %v420
            %v432 = vadd.f32 %v429, %v431
            %v433 = vmul.f32 %v422, %v427
            %434 = vst.msk [vmem:[#allocation4] sm:$0xf] %vm378, %v433
            %v435 = vmul.f32 %v422, %v432
            %v436 = vsub.f32 %v423, %v435
            %437 = vst.msk [vmem:[#allocation5] sm:$0xf] %vm378, %v436
          $region52: #{tpu_custom_call.1} parent=39 // pred_fallthru
            _
        $region40: #{tpu_custom_call.1} parent=35 // pred_fallthru
          _
        %p438 = scmp.eq.s32.totalorder %s24, 1
        // Predicated region
        $region53: #{tpu_custom_call.1} parent=35 // pred_check
          %p439 = pneg %p438
        $region54: #{tpu_custom_call.1} parent=35 // pred_check_branch
          %441 = sbr.rel (%p439) target = $region56
        $region55: #{tpu_custom_call.1} parent=35 // pred_region
          %v442 = vld [vmem:[%s259] sm:$0xff]
          %v443 = vld [vmem:[#allocation4] sm:$0xf]
          %445 = vset.pattern.permute.xlu0 0
          %446 = vperm.xlu0 %445, %v443
          %v447 = vpop.permute.xlu0 %446
          %v449 = vunpack.c.l.s4 839922192
          %v450 = vunpack.c.0.s8 %v449
          %v451 = vperm.slane %v447, %v450
          %v453 = vmul.f32 %v442, %v451
          %v454 = vld [vmem:[#allocation5] sm:$0xf]
          %456 = vset.pattern.permute.xlu0 0
          %457 = vperm.xlu0 %456, %v454
          %v458 = vpop.permute.xlu0 %457
          %v460 = vunpack.c.l.s4 839922192
          %v461 = vunpack.c.0.s8 %v460
          %v462 = vperm.slane %v458, %v461
          %v464 = vadd.f32 %v453, %v462
          %465 = vst [vmem:[%s250] sm:$0xff] %v464
        $region56: #{tpu_custom_call.1} parent=35 // pred_fallthru
          _
        %s466 = sand.u32 %s150, 1
        %s467 = scalar_lea.sflag [#allocation7], %s466
        %s468 = sand.u32 %s150, 1
        %s469 = smul.addr %s468, 8
        %s470 = scalar_lea.vmem [#allocation6], %s469
        // Predicated region
        $region57: #{tpu_custom_call.1} parent=35 // pred_check
          %p471 = pneg %p160
        $region58: #{tpu_custom_call.1} parent=35 // pred_check_branch
          %473 = sbr.rel (%p471) target = $region60
        $region59: #{tpu_custom_call.1} parent=35 // pred_region
          %s474 = smul.u32 %s25, %s24
          %s475 = smul.u32 2, %s474
          %477 = vsyncadd %s467, 0
          %s478 = smul.addr %s23, 2
          %s479 = sadd.s32 %s475, %s478
          %s480 = smul.addr %s479, 4
          %s481 = scalar_lea.hbm %s4, %s480
          %s483 = sshll.u32 %s470, 4
          %s484 = int_to_ptr.vmem [resolvable:$true] %s483
          %s485 = sshll.u32 %s481, 4
          %s486 = int_to_ptr.hbm [resolvable:$true] %s485
          %488 = dma.vmem_to_hbm [thread:$0]  %s484, 128, %s486, %s467
        $region60: #{tpu_custom_call.1} parent=35 // pred_fallthru
          _
      $region36: #{tpu_custom_call.1} parent=5 // pred_fallthru
        _
      %p489 = scmp.le.s32.totalorder 2, %s13
      // Predicated region
      $region61: #{tpu_custom_call.1} parent=5 // pred_check
        %p490 = pneg %p489
      $region62: #{tpu_custom_call.1} parent=5 // pred_check_branch
        %492 = sbr.rel (%p490) target = $region64
      $region63: #{tpu_custom_call.1} parent=5 // pred_region
        %s493 = ssub.s32 %s13, 2
        // Predicated region
        $region65: #{tpu_custom_call.1} parent=63 // pred_check
          %p494 = pneg %p166
        $region66: #{tpu_custom_call.1} parent=63 // pred_check_branch
          %496 = sbr.rel (%p494) target = $region68
        $region67: #{tpu_custom_call.1} parent=63 // pred_region
          %s497 = sand.u32 %s151, 1
          %s498 = scalar_lea.sflag [#allocation7], %s497
          %s499 = sand.u32 %s151, 1
          %s500 = smul.addr %s499, 8
          %s501 = scalar_lea.vmem [#allocation6], %s500
          %503 = dma.done %s498, 128
        $region68: #{tpu_custom_call.1} parent=63 // pred_fallthru
          _
      $region64: #{tpu_custom_call.1} parent=5 // pred_fallthru
        _
    $region6: #{tpu_custom_call.1} parent=1 // loop_footer
      %s17 = sadd.s32 1, %s13
    $region7: #{tpu_custom_call.1} parent=1 // loop_footer_branch
      %12 = sbr.rel target = $region3
    $region8: #{tpu_custom_call.1} parent=1 // loop_exit
      _
    %504 = vsyncpa [#allocation7], 1
    %s505 = scalar_lea.sflag [#allocation7], 1
    %506 = vsyncpa %s505, 1

</llo_original>
